<compile_context>
chip_gen: v7x
topology: tpu7x:2x2x1
jax: 0.10.0
libtpu: 0.0.40
codegen_flags: <defaults>
</compile_context>

<pallas_src>
import functools

import jax
import jax.numpy as jnp
from jax import lax
from jax.experimental import pallas as pl
from jax.experimental.pallas import tpu as pltpu


def _round_up(n: int, m: int) -> int:
    return ((n + m - 1) // m) * m


def esn_cell_kernel(x_ref, wih_t_ref, whh_t_ref, bias_ref, h_out_ref, ih_scr,
                    *, num_steps: int, unroll):
    """ESN recurrence with hoisted input projection and a vreg-carried hidden row."""
    Hp = h_out_ref.shape[1]

    # Hoisted input projection + pre-summed biases: one (Tp,Ip)x(Ip,Hp) MXU matmul.
    ih_scr[...] = (
        jnp.dot(x_ref[...], wih_t_ref[...], preferred_element_type=jnp.float32)
        + bias_ref[...]
    )

    # hx starts at zeros, so all T rows of hx stay identical at every step: carry one
    # sublane-aligned (8, Hp) block (all 8 rows identical) in vregs as the loop carry.
    def step(t, h):
        ih_row = ih_scr[pl.ds(t, 1), :]                                           # (1, Hp)
        hh = jnp.dot(h, whh_t_ref[...], preferred_element_type=jnp.float32)       # (8, Hp)
        return jnp.tanh(hh + ih_row)                                              # (8, Hp)

    h0 = jnp.zeros((8, Hp), jnp.float32)
    h_final = lax.fori_loop(0, num_steps, step, h0, unroll=unroll)

    # All T rows of the PyTorch result are identical -> single broadcast + store.
    h_out_ref[...] = jnp.broadcast_to(h_final[0:1, :], h_out_ref.shape).astype(h_out_ref.dtype)


def esn_cell_forward(x, w_ih, w_hh, b_ih, b_hh):
    """x (T, I); w_ih (H, I); w_hh (H, H); b_ih, b_hh (H,). Returns hx (T, H)."""
    T, I = x.shape
    H = w_ih.shape[0]
    assert w_ih.shape == (H, I) and w_hh.shape == (H, H)
    assert b_ih.shape == (H,) and b_hh.shape == (H,)

    # Pad to TPU-friendly shapes: lanes (last dim) to 128, sublanes to 8.
    Tp = _round_up(T, 8)
    Ip = _round_up(I, 128)
    Hp = _round_up(H, 128)

    f32 = jnp.float32
    x_p   = jnp.zeros((Tp, Ip), f32).at[:T, :I].set(x.astype(f32))
    wih_t = jnp.zeros((Ip, Hp), f32).at[:I, :H].set(w_ih.astype(f32).T)   # (Ip, Hp)
    whh_t = jnp.zeros((Hp, Hp), f32).at[:H, :H].set(w_hh.astype(f32).T)   # (Hp, Hp)
    bias  = jnp.zeros((1,  Hp), f32).at[0, :H].set((b_ih + b_hh).astype(f32))

    # Everything is resident in VMEM (no grid): budget it explicitly so large H/T
    # doesn't hit the scoped default (16 MiB on v5e / 32 MiB on v6e); cap at v7x's
    # 64 MiB physical VMEM.
    resident_bytes = 4 * (x_p.size + wih_t.size + whh_t.size + bias.size + 2 * Tp * Hp)
    vmem_limit = int(min(max(2 * resident_bytes, 16 * 1024 * 1024), 64 * 1024 * 1024))

    unroll = True if T <= 16 else 8
    kernel = functools.partial(esn_cell_kernel, num_steps=T, unroll=unroll)

    out_p = pl.pallas_call(
        kernel,
        out_shape=jax.ShapeDtypeStruct((Tp, Hp), x.dtype),
        in_specs=[pl.BlockSpec(memory_space=pltpu.MemorySpace.VMEM)] * 4,
        out_specs=pl.BlockSpec(memory_space=pltpu.MemorySpace.VMEM),
        scratch_shapes=[pltpu.VMEM((Tp, Hp), jnp.float32)],   # ih_all buffer
        compiler_params=pltpu.CompilerParams(vmem_limit_bytes=vmem_limit),
    )(x_p, wih_t, whh_t, bias)

    return out_p[:T, :H]


def esn_cell_reference(x, w_ih, w_hh, b_ih, b_hh):
    """Pure-JAX reference with the exact PyTorch ESNCell semantics."""
    T, _ = x.shape
    H = w_ih.shape[0]
    hx = jnp.zeros((T, H), x.dtype)
    for t in range(T):
        x_t = x[t:t + 1, :]                                   # (1, I)
        pre = x_t @ w_ih.T + b_ih + hx @ w_hh.T + b_hh        # (1,H)+(T,H) -> (T,H)
        hx = jnp.tanh(pre)
    return hx


if __name__ == "__main__":
    input_size = 16
    hidden_size = 32
    batch = 8  # leading dim of the 2-D input; also the number of recurrence steps

    key = jax.random.PRNGKey(0)
    k_x, k_ih, k_hh, k_bih, k_bhh = jax.random.split(key, 5)

    # Deterministic synthetic parameters (shapes from ESNCellBase.init_parameters).
    # TODO(synk): WeightInitializer's exact distribution (e.g. spectral-radius scaling)
    # is not specified; using scaled uniform init with matching shapes.
    x = jax.random.normal(k_x, (batch, input_size), jnp.float32)
    w_ih = jax.random.uniform(k_ih, (hidden_size, input_size), jnp.float32, -0.5, 0.5)
    w_hh = jax.random.uniform(k_hh, (hidden_size, hidden_size), jnp.float32, -0.5, 0.5) * 0.3
    b_ih = jax.random.uniform(k_bih, (hidden_size,), jnp.float32, -0.1, 0.1)
    b_hh = jax.random.uniform(k_bhh, (hidden_size,), jnp.float32, -0.1, 0.1)

    out = esn_cell_forward(x, w_ih, w_hh, b_ih, b_hh)
    out = jax.block_until_ready(out)

    ref = esn_cell_reference(x, w_ih, w_hh, b_ih, b_hh)
    assert out.shape == (batch, hidden_size)
    assert jnp.allclose(out, ref, atol=1e-5, rtol=1e-5), "Pallas output mismatch vs reference"

    print("KERNEL_OK")
</pallas_src>

<mosaic_0001>
module attributes {stable_mosaic.version = 11 : i64} {
  func.func @esn_cell_kernel(%arg0: memref<8x128xf32, #tpu.memory_space<vmem>>, %arg1: memref<128x128xf32, #tpu.memory_space<vmem>>, %arg2: memref<128x128xf32, #tpu.memory_space<vmem>>, %arg3: memref<1x128xf32, #tpu.memory_space<vmem>>, %arg4: memref<8x128xf32, #tpu.memory_space<vmem>>, %arg5: memref<8x128xf32, #tpu.memory_space<vmem>>) attributes {dimension_semantics = [], scalar_prefetch = 0 : i64, scratch_operands = 1 : i64, tpu.core_type = #tpu.core_type<tc>} {
    %c0 = arith.constant 0 : index
    %c0_0 = arith.constant 0 : index
    %0 = vector.load %arg0[%c0, %c0_0] : memref<8x128xf32, #tpu.memory_space<vmem>>, vector<8x128xf32>
    %c0_1 = arith.constant 0 : index
    %c0_2 = arith.constant 0 : index
    %1 = vector.load %arg1[%c0_1, %c0_2] : memref<128x128xf32, #tpu.memory_space<vmem>>, vector<128x128xf32>
    %cst = arith.constant dense<0.000000e+00> : vector<8x128xf32>
    %2 = tpu.matmul %0, %1, %cst {dimension_numbers = #tpu.dot_dimension_numbers<[1], [0], [0], [1], [0, 0, 1, 1], [], []>} : vector<8x128xf32>, vector<128x128xf32>, vector<8x128xf32> -> vector<8x128xf32>
    %c0_3 = arith.constant 0 : index
    %c0_4 = arith.constant 0 : index
    %3 = vector.load %arg3[%c0_3, %c0_4] : memref<1x128xf32, #tpu.memory_space<vmem>>, vector<1x128xf32>
    %4 = vector.broadcast %3 : vector<1x128xf32> to vector<8x128xf32>
    %5 = arith.addf %2, %4 : vector<8x128xf32>
    %c0_5 = arith.constant 0 : index
    %c0_6 = arith.constant 0 : index
    %6 = vector.load %arg5[%c0_5, %c0_6] : memref<8x128xf32, #tpu.memory_space<vmem>>, vector<8x128xf32>
    tpu.vector_store %arg5[%c0_5, %c0_6], %5 {strides = array<i32>} : memref<8x128xf32, #tpu.memory_space<vmem>>, vector<8x128xf32>,
    %cst_7 = arith.constant 0.000000e+00 : f32
    %7 = vector.broadcast %cst_7 : f32 to vector<8x128xf32>
    %c0_i32 = arith.constant 0 : i32
    %8 = arith.index_cast %c0_i32 : i32 to index
    %c0_8 = arith.constant 0 : index
    %9 = vector.load %arg5[%8, %c0_8] : memref<8x128xf32, #tpu.memory_space<vmem>>, vector<1x128xf32>
    %c0_9 = arith.constant 0 : index
    %c0_10 = arith.constant 0 : index
    %10 = vector.load %arg2[%c0_9, %c0_10] : memref<128x128xf32, #tpu.memory_space<vmem>>, vector<128x128xf32>
    %cst_11 = arith.constant dense<0.000000e+00> : vector<8x128xf32>
    %11 = tpu.matmul %7, %10, %cst_11 {dimension_numbers = #tpu.dot_dimension_numbers<[1], [0], [0], [1], [0, 0, 1, 1], [], []>} : vector<8x128xf32>, vector<128x128xf32>, vector<8x128xf32> -> vector<8x128xf32>
    %12 = vector.broadcast %9 : vector<1x128xf32> to vector<8x128xf32>
    %13 = arith.addf %11, %12 : vector<8x128xf32>
    %14 = math.tanh %13 : vector<8x128xf32>
    %c1_i32 = arith.constant 1 : i32
    %15 = arith.index_cast %c1_i32 : i32 to index
    %c0_12 = arith.constant 0 : index
    %16 = vector.load %arg5[%15, %c0_12] : memref<8x128xf32, #tpu.memory_space<vmem>>, vector<1x128xf32>
    %c0_13 = arith.constant 0 : index
    %c0_14 = arith.constant 0 : index
    %17 = vector.load %arg2[%c0_13, %c0_14] : memref<128x128xf32, #tpu.memory_space<vmem>>, vector<128x128xf32>
    %cst_15 = arith.constant dense<0.000000e+00> : vector<8x128xf32>
    %18 = tpu.matmul %14, %17, %cst_15 {dimension_numbers = #tpu.dot_dimension_numbers<[1], [0], [0], [1], [0, 0, 1, 1], [], []>} : vector<8x128xf32>, vector<128x128xf32>, vector<8x128xf32> -> vector<8x128xf32>
    %19 = vector.broadcast %16 : vector<1x128xf32> to vector<8x128xf32>
    %20 = arith.addf %18, %19 : vector<8x128xf32>
    %21 = math.tanh %20 : vector<8x128xf32>
    %c2_i32 = arith.constant 2 : i32
    %22 = arith.index_cast %c2_i32 : i32 to index
    %c0_16 = arith.constant 0 : index
    %23 = vector.load %arg5[%22, %c0_16] : memref<8x128xf32, #tpu.memory_space<vmem>>, vector<1x128xf32>
    %c0_17 = arith.constant 0 : index
    %c0_18 = arith.constant 0 : index
    %24 = vector.load %arg2[%c0_17, %c0_18] : memref<128x128xf32, #tpu.memory_space<vmem>>, vector<128x128xf32>
    %cst_19 = arith.constant dense<0.000000e+00> : vector<8x128xf32>
    %25 = tpu.matmul %21, %24, %cst_19 {dimension_numbers = #tpu.dot_dimension_numbers<[1], [0], [0], [1], [0, 0, 1, 1], [], []>} : vector<8x128xf32>, vector<128x128xf32>, vector<8x128xf32> -> vector<8x128xf32>
    %26 = vector.broadcast %23 : vector<1x128xf32> to vector<8x128xf32>
    %27 = arith.addf %25, %26 : vector<8x128xf32>
    %28 = math.tanh %27 : vector<8x128xf32>
    %c3_i32 = arith.constant 3 : i32
    %29 = arith.index_cast %c3_i32 : i32 to index
    %c0_20 = arith.constant 0 : index
    %30 = vector.load %arg5[%29, %c0_20] : memref<8x128xf32, #tpu.memory_space<vmem>>, vector<1x128xf32>
    %c0_21 = arith.constant 0 : index
    %c0_22 = arith.constant 0 : index
    %31 = vector.load %arg2[%c0_21, %c0_22] : memref<128x128xf32, #tpu.memory_space<vmem>>, vector<128x128xf32>
    %cst_23 = arith.constant dense<0.000000e+00> : vector<8x128xf32>
    %32 = tpu.matmul %28, %31, %cst_23 {dimension_numbers = #tpu.dot_dimension_numbers<[1], [0], [0], [1], [0, 0, 1, 1], [], []>} : vector<8x128xf32>, vector<128x128xf32>, vector<8x128xf32> -> vector<8x128xf32>
    %33 = vector.broadcast %30 : vector<1x128xf32> to vector<8x128xf32>
    %34 = arith.addf %32, %33 : vector<8x128xf32>
    %35 = math.tanh %34 : vector<8x128xf32>
    %c4_i32 = arith.constant 4 : i32
    %36 = arith.index_cast %c4_i32 : i32 to index
    %c0_24 = arith.constant 0 : index
    %37 = vector.load %arg5[%36, %c0_24] : memref<8x128xf32, #tpu.memory_space<vmem>>, vector<1x128xf32>
    %c0_25 = arith.constant 0 : index
    %c0_26 = arith.constant 0 : index
    %38 = vector.load %arg2[%c0_25, %c0_26] : memref<128x128xf32, #tpu.memory_space<vmem>>, vector<128x128xf32>
    %cst_27 = arith.constant dense<0.000000e+00> : vector<8x128xf32>
    %39 = tpu.matmul %35, %38, %cst_27 {dimension_numbers = #tpu.dot_dimension_numbers<[1], [0], [0], [1], [0, 0, 1, 1], [], []>} : vector<8x128xf32>, vector<128x128xf32>, vector<8x128xf32> -> vector<8x128xf32>
    %40 = vector.broadcast %37 : vector<1x128xf32> to vector<8x128xf32>
    %41 = arith.addf %39, %40 : vector<8x128xf32>
    %42 = math.tanh %41 : vector<8x128xf32>
    %c5_i32 = arith.constant 5 : i32
    %43 = arith.index_cast %c5_i32 : i32 to index
    %c0_28 = arith.constant 0 : index
    %44 = vector.load %arg5[%43, %c0_28] : memref<8x128xf32, #tpu.memory_space<vmem>>, vector<1x128xf32>
    %c0_29 = arith.constant 0 : index
    %c0_30 = arith.constant 0 : index
    %45 = vector.load %arg2[%c0_29, %c0_30] : memref<128x128xf32, #tpu.memory_space<vmem>>, vector<128x128xf32>
    %cst_31 = arith.constant dense<0.000000e+00> : vector<8x128xf32>
    %46 = tpu.matmul %42, %45, %cst_31 {dimension_numbers = #tpu.dot_dimension_numbers<[1], [0], [0], [1], [0, 0, 1, 1], [], []>} : vector<8x128xf32>, vector<128x128xf32>, vector<8x128xf32> -> vector<8x128xf32>
    %47 = vector.broadcast %44 : vector<1x128xf32> to vector<8x128xf32>
    %48 = arith.addf %46, %47 : vector<8x128xf32>
    %49 = math.tanh %48 : vector<8x128xf32>
    %c6_i32 = arith.constant 6 : i32
    %50 = arith.index_cast %c6_i32 : i32 to index
    %c0_32 = arith.constant 0 : index
    %51 = vector.load %arg5[%50, %c0_32] : memref<8x128xf32, #tpu.memory_space<vmem>>, vector<1x128xf32>
    %c0_33 = arith.constant 0 : index
    %c0_34 = arith.constant 0 : index
    %52 = vector.load %arg2[%c0_33, %c0_34] : memref<128x128xf32, #tpu.memory_space<vmem>>, vector<128x128xf32>
    %cst_35 = arith.constant dense<0.000000e+00> : vector<8x128xf32>
    %53 = tpu.matmul %49, %52, %cst_35 {dimension_numbers = #tpu.dot_dimension_numbers<[1], [0], [0], [1], [0, 0, 1, 1], [], []>} : vector<8x128xf32>, vector<128x128xf32>, vector<8x128xf32> -> vector<8x128xf32>
    %54 = vector.broadcast %51 : vector<1x128xf32> to vector<8x128xf32>
    %55 = arith.addf %53, %54 : vector<8x128xf32>
    %56 = math.tanh %55 : vector<8x128xf32>
    %c7_i32 = arith.constant 7 : i32
    %57 = arith.index_cast %c7_i32 : i32 to index
    %c0_36 = arith.constant 0 : index
    %58 = vector.load %arg5[%57, %c0_36] : memref<8x128xf32, #tpu.memory_space<vmem>>, vector<1x128xf32>
    %c0_37 = arith.constant 0 : index
    %c0_38 = arith.constant 0 : index
    %59 = vector.load %arg2[%c0_37, %c0_38] : memref<128x128xf32, #tpu.memory_space<vmem>>, vector<128x128xf32>
    %cst_39 = arith.constant dense<0.000000e+00> : vector<8x128xf32>
    %60 = tpu.matmul %56, %59, %cst_39 {dimension_numbers = #tpu.dot_dimension_numbers<[1], [0], [0], [1], [0, 0, 1, 1], [], []>} : vector<8x128xf32>, vector<128x128xf32>, vector<8x128xf32> -> vector<8x128xf32>
    %61 = vector.broadcast %58 : vector<1x128xf32> to vector<8x128xf32>
    %62 = arith.addf %60, %61 : vector<8x128xf32>
    %63 = math.tanh %62 : vector<8x128xf32>
    %c8_i32 = arith.constant 8 : i32
    %64 = vector.extract_strided_slice %63 {offsets = [0, 0], sizes = [1, 128], strides = [1, 1]} : vector<8x128xf32> to vector<1x128xf32>
    %65 = vector.shape_cast %64 : vector<1x128xf32> to vector<1x128xf32>
    %66 = vector.broadcast %65 : vector<1x128xf32> to vector<8x128xf32>
    %c0_40 = arith.constant 0 : index
    %c0_41 = arith.constant 0 : index
    %67 = vector.load %arg4[%c0_40, %c0_41] : memref<8x128xf32, #tpu.memory_space<vmem>>, vector<8x128xf32>
    tpu.vector_store %arg4[%c0_40, %c0_41], %66 {strides = array<i32>} : memref<8x128xf32, #tpu.memory_space<vmem>>, vector<8x128xf32>,
    return
  }
}

</mosaic_0001>

<llo_original>
// kernel: tpu_custom_call.1
$region0: #{tpu_custom_call.1}
  #allocation0 [shape = 'u32[]', space=smem, size = 0x4, offset = 0x4, fixed_abs, tag = 'smem constant byte address 0x4 - core index']
  #allocation1 [shape = 'u32[144,128]{1,0:T(1,128)}', space=vmem, size = 0x12000, scoped, tag = 'internal scratch']
  #allocation2 [shape = 'f32[8,128]{1,0:T(8,128)}', space=vmem, size = 0x1000, scoped, tag = 'scratch operand']
  %s0 = inlined_call_operand.hbm [shape: f32[8,128], index: 0, kind: input, shape index: {}]
  %s1 = inlined_call_operand.hbm [shape: f32[128,128], index: 1, kind: input, shape index: {}]
  %s2 = inlined_call_operand.hbm [shape: f32[128,128], index: 2, kind: input, shape index: {}]
  %s3 = inlined_call_operand.vmem [shape: f32[1,128], index: 3, kind: input, shape index: {}]
  %s4 = inlined_call_operand.hbm [shape: f32[8,128], index: 4, kind: output, shape index: {}]
  %s5 = sld [smem:[#allocation0]]
  $region38: #{tpu_custom_call.1} parent=0
    _
  %s7 = ssub.s32 1, %s5
  %s8 = scalar_select 0, %s7, %s5
  $region1: #{tpu_custom_call.1} parent=0
    #allocation3 [shape = 'u8[4096]{0}', space=vmem, size = 0x1000, scoped, tag = 'input window, operand 0, single buffered']
    #allocation4 [shape = 's32[1]{0}', space=sflag, size = 0x4, scoped, tag = 'scoped memory for tpu_custom_call.1']
    #allocation5 [shape = 's32[1]{0}', space=sflag, size = 0x4, scoped, tag = 'scoped memory for tpu_custom_call.1']
    #allocation6 [shape = 'u8[65536]{0}', space=vmem, size = 0x10000, scoped, tag = 'input window, operand 1, single buffered']
    #allocation7 [shape = 's32[1]{0}', space=sflag, size = 0x4, scoped, tag = 'scoped memory for tpu_custom_call.1']
    #allocation8 [shape = 'u8[65536]{0}', space=vmem, size = 0x10000, scoped, tag = 'input window, operand 2, single buffered']
    #allocation9 [shape = 'u8[4096]{0}', space=vmem, size = 0x1000, scoped, tag = 'output window, operand 0, single buffered']
    %9 = vsyncpa [#allocation4], 0
    %10 = vsyncpa [#allocation7], 0
    %11 = vsyncpa [#allocation5], 0
    // Predicated region
    $region2: #{tpu_custom_call.1} parent=1 // pred_check
      _
    $region3: #{tpu_custom_call.1} parent=1 // pred_check_branch
      %13 = sbr.rel (0) target = $region5
    $region4: #{tpu_custom_call.1} parent=1 // pred_region
      %s15 = ssub.s32 128, 128
      %16 = vsyncadd [#allocation4], %s15
      %s18 = sshll.u32 [#allocation3], 4
      %s19 = int_to_ptr.vmem [resolvable:$true] %s18
      %21 = dma.hbm_to_vmem [thread:$0]  %s0, 128, %s19, [#allocation4]
    $region5: #{tpu_custom_call.1} parent=1 // pred_fallthru
      _
    // Predicated region
    $region6: #{tpu_custom_call.1} parent=1 // pred_check
      _
    $region7: #{tpu_custom_call.1} parent=1 // pred_check_branch
      %23 = sbr.rel (0) target = $region9
    $region8: #{tpu_custom_call.1} parent=1 // pred_region
      %s25 = ssub.s32 2048, 2048
      %26 = vsyncadd [#allocation7], %s25
      %s27 = sshll.u32 [#allocation6], 4
      %s28 = int_to_ptr.vmem [resolvable:$true] %s27
      %33 = dma.hbm_to_vmem [thread:$0]  %s1, 2048, %s28, [#allocation7], 128, 128, 8
    $region9: #{tpu_custom_call.1} parent=1 // pred_fallthru
      _
    // Predicated region
    $region10: #{tpu_custom_call.1} parent=1 // pred_check
      _
    $region11: #{tpu_custom_call.1} parent=1 // pred_check_branch
      %35 = sbr.rel (0) target = $region13
    $region12: #{tpu_custom_call.1} parent=1 // pred_region
      %s37 = ssub.s32 2048, 2048
      %38 = vsyncadd [#allocation7], %s37
      %s39 = sshll.u32 [#allocation8], 4
      %s40 = int_to_ptr.vmem [resolvable:$true] %s39
      %45 = dma.hbm_to_vmem [thread:$0]  %s2, 2048, %s40, [#allocation7], 128, 128, 8
    $region13: #{tpu_custom_call.1} parent=1 // pred_fallthru
      _
    // Predicated region
    $region14: #{tpu_custom_call.1} parent=1 // pred_check
      _
    $region15: #{tpu_custom_call.1} parent=1 // pred_check_branch
      %47 = sbr.rel (0) target = $region17
    $region16: #{tpu_custom_call.1} parent=1 // pred_region
      _
    $region17: #{tpu_custom_call.1} parent=1 // pred_fallthru
      _
    // Predicated region
    $region18: #{tpu_custom_call.1} parent=1 // pred_check
      _
    $region19: #{tpu_custom_call.1} parent=1 // pred_check_branch
      %49 = sbr.rel (0) target = $region21
    $region20: #{tpu_custom_call.1} parent=1 // pred_region
      %50 = dma.done [#allocation4], 128
    $region21: #{tpu_custom_call.1} parent=1 // pred_fallthru
      _
    // Predicated region
    $region22: #{tpu_custom_call.1} parent=1 // pred_check
      _
    $region23: #{tpu_custom_call.1} parent=1 // pred_check_branch
      %52 = sbr.rel (0) target = $region25
    $region24: #{tpu_custom_call.1} parent=1 // pred_region
      %53 = dma.done [#allocation7], 2048
    $region25: #{tpu_custom_call.1} parent=1 // pred_fallthru
      _
    // Predicated region
    $region26: #{tpu_custom_call.1} parent=1 // pred_check
      _
    $region27: #{tpu_custom_call.1} parent=1 // pred_check_branch
      %55 = sbr.rel (0) target = $region29
    $region28: #{tpu_custom_call.1} parent=1 // pred_region
      %56 = dma.done [#allocation7], 2048
    $region29: #{tpu_custom_call.1} parent=1 // pred_fallthru
      _
    %v57 = vld [vmem:[#allocation3] sm:$0xff]
    %v58 = vld [vmem:[#allocation6] sm:$0xff]
    %v59 = vld [vmem:[#allocation6 + $0x8] sm:$0xff]
    %v60 = vld [vmem:[#allocation6 + $0x10] sm:$0xff]
    %v61 = vld [vmem:[#allocation6 + $0x18] sm:$0xff]
    %v62 = vld [vmem:[#allocation6 + $0x20] sm:$0xff]
    %v63 = vld [vmem:[#allocation6 + $0x28] sm:$0xff]
    %v64 = vld [vmem:[#allocation6 + $0x30] sm:$0xff]
    %v65 = vld [vmem:[#allocation6 + $0x38] sm:$0xff]
    %v66 = vld [vmem:[#allocation6 + $0x40] sm:$0xff]
    %v67 = vld [vmem:[#allocation6 + $0x48] sm:$0xff]
    %v68 = vld [vmem:[#allocation6 + $0x50] sm:$0xff]
    %v69 = vld [vmem:[#allocation6 + $0x58] sm:$0xff]
    %v70 = vld [vmem:[#allocation6 + $0x60] sm:$0xff]
    %v71 = vld [vmem:[#allocation6 + $0x68] sm:$0xff]
    %v72 = vld [vmem:[#allocation6 + $0x70] sm:$0xff]
    %v73 = vld [vmem:[#allocation6 + $0x78] sm:$0xff]
    %v74 = vld [vmem:[%s3] sm:$0x1]
    %v76 = vlaneseq
    %v77 = vshrl.u32 %v76, 7
    %v78 = vsub.s32 0, %v77
    %v79 = vrot.slane %v74, %v78
    %81 = vmatprep.subr.mxu0 0.0
    %82 = vmatpush1.msra.mxu0 %v58
    %83 = vmatprep.subr.mxu0 0.0
    %84 = vmatpush1.msra.mxu0 %v59
    %85 = vmatprep.subr.mxu0 0.0
    %86 = vmatpush1.msra.mxu0 %v60
    %87 = vmatprep.subr.mxu0 0.0
    %88 = vmatpush1.msra.mxu0 %v61
    %89 = vmatprep.subr.mxu0 0.0
    %90 = vmatpush1.msra.mxu0 %v62
    %91 = vmatprep.subr.mxu0 0.0
    %92 = vmatpush1.msra.mxu0 %v63
    %93 = vmatprep.subr.mxu0 0.0
    %94 = vmatpush1.msra.mxu0 %v64
    %95 = vmatprep.subr.mxu0 0.0
    %96 = vmatpush1.msra.mxu0 %v65
    %97 = vmatprep.subr.mxu0 0.0
    %98 = vmatpush1.msra.mxu0 %v66
    %99 = vmatprep.subr.mxu0 0.0
    %100 = vmatpush1.msra.mxu0 %v67
    %101 = vmatprep.subr.mxu0 0.0
    %102 = vmatpush1.msra.mxu0 %v68
    %103 = vmatprep.subr.mxu0 0.0
    %104 = vmatpush1.msra.mxu0 %v69
    %105 = vmatprep.subr.mxu0 0.0
    %106 = vmatpush1.msra.mxu0 %v70
    %107 = vmatprep.subr.mxu0 0.0
    %108 = vmatpush1.msra.mxu0 %v71
    %109 = vmatprep.subr.mxu0 0.0
    %110 = vmatpush1.msra.mxu0 %v72
    %111 = vmatprep.subr.mxu0 0.0
    %112 = vmatpush1.msra.mxu0 %v73
    %113 = vmatprep.subr.mxu0 0.0
    %114 = vmatpush1.msra.mxu0 0.0
    %115 = vmatprep.subr.mxu0 0.0
    %116 = vmatpush1.msra.mxu0 0.0
    %117 = vmatprep.subr.mxu0 0.0
    %118 = vmatpush1.msra.mxu0 0.0
    %119 = vmatprep.subr.mxu0 0.0
    %120 = vmatpush1.msra.mxu0 0.0
    %121 = vmatprep.subr.mxu0 0.0
    %122 = vmatpush1.msra.mxu0 0.0
    %123 = vmatprep.subr.mxu0 0.0
    %124 = vmatpush1.msra.mxu0 0.0
    %125 = vmatprep.subr.mxu0 0.0
    %126 = vmatpush1.msra.mxu0 0.0
    %127 = vmatprep.subr.mxu0 0.0
    %128 = vmatpush1.msra.mxu0 0.0
    %129 = vmatprep.subr.mxu0 0.0
    %130 = vmatpush1.msra.mxu0 0.0
    %131 = vmatprep.subr.mxu0 0.0
    %132 = vmatpush1.msra.mxu0 0.0
    %133 = vmatprep.subr.mxu0 0.0
    %134 = vmatpush1.msra.mxu0 0.0
    %135 = vmatprep.subr.mxu0 0.0
    %136 = vmatpush1.msra.mxu0 0.0
    %137 = vmatprep.subr.mxu0 0.0
    %138 = vmatpush1.msra.mxu0 0.0
    %139 = vmatprep.subr.mxu0 0.0
    %140 = vmatpush1.msra.mxu0 0.0
    %141 = vmatprep.subr.mxu0 0.0
    %142 = vmatpush1.msra.mxu0 0.0
    %143 = vmatprep.subr.mxu0 0.0
    %144 = vmatpush1.msra.mxu0 0.0
    %145 = vmatprep.mubr.f32.mxu0 0.0
    %146 = vmatmul.mubr.f32.gmra.mrb[0].mxu0 %v57
    %v147 = vpop.f32.mrb[0].mxu0
    %v148 = vadd.f32 %v79, %v147
    %v149 = vpop.f32.mrb[0].mxu0
    %150 = vdwg.mxu0
    %151 = vst [vmem:[#allocation2] sm:$0xff] %v148
    %v152 = vld [vmem:[#allocation2] sm:$0x1]
    %v153 = vld [vmem:[#allocation8] sm:$0xff]
    %v154 = vld [vmem:[#allocation8 + $0x8] sm:$0xff]
    %v155 = vld [vmem:[#allocation8 + $0x10] sm:$0xff]
    %v156 = vld [vmem:[#allocation8 + $0x18] sm:$0xff]
    %v157 = vld [vmem:[#allocation8 + $0x20] sm:$0xff]
    %v158 = vld [vmem:[#allocation8 + $0x28] sm:$0xff]
    %v159 = vld [vmem:[#allocation8 + $0x30] sm:$0xff]
    %v160 = vld [vmem:[#allocation8 + $0x38] sm:$0xff]
    %v161 = vld [vmem:[#allocation8 + $0x40] sm:$0xff]
    %v162 = vld [vmem:[#allocation8 + $0x48] sm:$0xff]
    %v163 = vld [vmem:[#allocation8 + $0x50] sm:$0xff]
    %v164 = vld [vmem:[#allocation8 + $0x58] sm:$0xff]
    %v165 = vld [vmem:[#allocation8 + $0x60] sm:$0xff]
    %v166 = vld [vmem:[#allocation8 + $0x68] sm:$0xff]
    %v167 = vld [vmem:[#allocation8 + $0x70] sm:$0xff]
    %v168 = vld [vmem:[#allocation8 + $0x78] sm:$0xff]
    %v169 = vlaneseq
    %v170 = vshrl.u32 %v169, 7
    %v171 = vsub.s32 0, %v170
    %v172 = vrot.slane %v152, %v171
    %173 = vmatprep.subr.mxu0 0.0
    %174 = vmatpush1.msra.mxu0 %v153
    %175 = vmatprep.subr.mxu0 0.0
    %176 = vmatpush1.msra.mxu0 %v154
    %177 = vmatprep.subr.mxu0 0.0
    %178 = vmatpush1.msra.mxu0 %v155
    %179 = vmatprep.subr.mxu0 0.0
    %180 = vmatpush1.msra.mxu0 %v156
    %181 = vmatprep.subr.mxu0 0.0
    %182 = vmatpush1.msra.mxu0 %v157
    %183 = vmatprep.subr.mxu0 0.0
    %184 = vmatpush1.msra.mxu0 %v158
    %185 = vmatprep.subr.mxu0 0.0
    %186 = vmatpush1.msra.mxu0 %v159
    %187 = vmatprep.subr.mxu0 0.0
    %188 = vmatpush1.msra.mxu0 %v160
    %189 = vmatprep.subr.mxu0 0.0
    %190 = vmatpush1.msra.mxu0 %v161
    %191 = vmatprep.subr.mxu0 0.0
    %192 = vmatpush1.msra.mxu0 %v162
    %193 = vmatprep.subr.mxu0 0.0
    %194 = vmatpush1.msra.mxu0 %v163
    %195 = vmatprep.subr.mxu0 0.0
    %196 = vmatpush1.msra.mxu0 %v164
    %197 = vmatprep.subr.mxu0 0.0
    %198 = vmatpush1.msra.mxu0 %v165
    %199 = vmatprep.subr.mxu0 0.0
    %200 = vmatpush1.msra.mxu0 %v166
    %201 = vmatprep.subr.mxu0 0.0
    %202 = vmatpush1.msra.mxu0 %v167
    %203 = vmatprep.subr.mxu0 0.0
    %204 = vmatpush1.msra.mxu0 %v168
    %205 = vmatprep.subr.mxu0 0.0
    %206 = vmatpush1.msra.mxu0 0.0
    %207 = vmatprep.subr.mxu0 0.0
    %208 = vmatpush1.msra.mxu0 0.0
    %209 = vmatprep.subr.mxu0 0.0
    %210 = vmatpush1.msra.mxu0 0.0
    %211 = vmatprep.subr.mxu0 0.0
    %212 = vmatpush1.msra.mxu0 0.0
    %213 = vmatprep.subr.mxu0 0.0
    %214 = vmatpush1.msra.mxu0 0.0
    %215 = vmatprep.subr.mxu0 0.0
    %216 = vmatpush1.msra.mxu0 0.0
    %217 = vmatprep.subr.mxu0 0.0
    %218 = vmatpush1.msra.mxu0 0.0
    %219 = vmatprep.subr.mxu0 0.0
    %220 = vmatpush1.msra.mxu0 0.0
    %221 = vmatprep.subr.mxu0 0.0
    %222 = vmatpush1.msra.mxu0 0.0
    %223 = vmatprep.subr.mxu0 0.0
    %224 = vmatpush1.msra.mxu0 0.0
    %225 = vmatprep.subr.mxu0 0.0
    %226 = vmatpush1.msra.mxu0 0.0
    %227 = vmatprep.subr.mxu0 0.0
    %228 = vmatpush1.msra.mxu0 0.0
    %229 = vmatprep.subr.mxu0 0.0
    %230 = vmatpush1.msra.mxu0 0.0
    %231 = vmatprep.subr.mxu0 0.0
    %232 = vmatpush1.msra.mxu0 0.0
    %233 = vmatprep.subr.mxu0 0.0
    %234 = vmatpush1.msra.mxu0 0.0
    %235 = vmatprep.subr.mxu0 0.0
    %236 = vmatpush1.msra.mxu0 0.0
    %237 = vmatprep.mubr.f32.mxu0 0.0
    %238 = vmatmul.mubr.f32.gmra.mrb[0].mxu0 0.0
    %v239 = vpop.f32.mrb[0].mxu0
    %v240 = vadd.f32 %v172, %v239
    %v241 = vpop.f32.mrb[0].mxu0
    %242 = vdwg.mxu0
    %v243 = vtanh.pop %v240
    %v244 = vld [vmem:[#allocation2 + $0x1] sm:$0x1]
    %v245 = vlaneseq
    %v246 = vshrl.u32 %v245, 7
    %v247 = vsub.s32 0, %v246
    %v248 = vrot.slane %v244, %v247
    %249 = vmatprep.subr.mxu0 0.0
    %250 = vmatpush1.msra.mxu0 %v153
    %251 = vmatprep.subr.mxu0 0.0
    %252 = vmatpush1.msra.mxu0 %v154
    %253 = vmatprep.subr.mxu0 0.0
    %254 = vmatpush1.msra.mxu0 %v155
    %255 = vmatprep.subr.mxu0 0.0
    %256 = vmatpush1.msra.mxu0 %v156
    %257 = vmatprep.subr.mxu0 0.0
    %258 = vmatpush1.msra.mxu0 %v157
    %259 = vmatprep.subr.mxu0 0.0
    %260 = vmatpush1.msra.mxu0 %v158
    %261 = vmatprep.subr.mxu0 0.0
    %262 = vmatpush1.msra.mxu0 %v159
    %263 = vmatprep.subr.mxu0 0.0
    %264 = vmatpush1.msra.mxu0 %v160
    %265 = vmatprep.subr.mxu0 0.0
    %266 = vmatpush1.msra.mxu0 %v161
    %267 = vmatprep.subr.mxu0 0.0
    %268 = vmatpush1.msra.mxu0 %v162
    %269 = vmatprep.subr.mxu0 0.0
    %270 = vmatpush1.msra.mxu0 %v163
    %271 = vmatprep.subr.mxu0 0.0
    %272 = vmatpush1.msra.mxu0 %v164
    %273 = vmatprep.subr.mxu0 0.0
    %274 = vmatpush1.msra.mxu0 %v165
    %275 = vmatprep.subr.mxu0 0.0
    %276 = vmatpush1.msra.mxu0 %v166
    %277 = vmatprep.subr.mxu0 0.0
    %278 = vmatpush1.msra.mxu0 %v167
    %279 = vmatprep.subr.mxu0 0.0
    %280 = vmatpush1.msra.mxu0 %v168
    %281 = vmatprep.subr.mxu0 0.0
    %282 = vmatpush1.msra.mxu0 0.0
    %283 = vmatprep.subr.mxu0 0.0
    %284 = vmatpush1.msra.mxu0 0.0
    %285 = vmatprep.subr.mxu0 0.0
    %286 = vmatpush1.msra.mxu0 0.0
    %287 = vmatprep.subr.mxu0 0.0
    %288 = vmatpush1.msra.mxu0 0.0
    %289 = vmatprep.subr.mxu0 0.0
    %290 = vmatpush1.msra.mxu0 0.0
    %291 = vmatprep.subr.mxu0 0.0
    %292 = vmatpush1.msra.mxu0 0.0
    %293 = vmatprep.subr.mxu0 0.0
    %294 = vmatpush1.msra.mxu0 0.0
    %295 = vmatprep.subr.mxu0 0.0
    %296 = vmatpush1.msra.mxu0 0.0
    %297 = vmatprep.subr.mxu0 0.0
    %298 = vmatpush1.msra.mxu0 0.0
    %299 = vmatprep.subr.mxu0 0.0
    %300 = vmatpush1.msra.mxu0 0.0
    %301 = vmatprep.subr.mxu0 0.0
    %302 = vmatpush1.msra.mxu0 0.0
    %303 = vmatprep.subr.mxu0 0.0
    %304 = vmatpush1.msra.mxu0 0.0
    %305 = vmatprep.subr.mxu0 0.0
    %306 = vmatpush1.msra.mxu0 0.0
    %307 = vmatprep.subr.mxu0 0.0
    %308 = vmatpush1.msra.mxu0 0.0
    %309 = vmatprep.subr.mxu0 0.0
    %310 = vmatpush1.msra.mxu0 0.0
    %311 = vmatprep.subr.mxu0 0.0
    %312 = vmatpush1.msra.mxu0 0.0
    %313 = vmatprep.mubr.f32.mxu0 0.0
    %314 = vmatmul.mubr.f32.gmra.mrb[0].mxu0 %v243
    %v315 = vpop.f32.mrb[0].mxu0
    %v316 = vadd.f32 %v248, %v315
    %v317 = vpop.f32.mrb[0].mxu0
    %318 = vdwg.mxu0
    %v319 = vtanh.pop %v316
    %v320 = vld [vmem:[#allocation2 + $0x2] sm:$0x1]
    %v321 = vlaneseq
    %v322 = vshrl.u32 %v321, 7
    %v323 = vsub.s32 0, %v322
    %v324 = vrot.slane %v320, %v323
    %325 = vmatprep.subr.mxu0 0.0
    %326 = vmatpush1.msra.mxu0 %v153
    %327 = vmatprep.subr.mxu0 0.0
    %328 = vmatpush1.msra.mxu0 %v154
    %329 = vmatprep.subr.mxu0 0.0
    %330 = vmatpush1.msra.mxu0 %v155
    %331 = vmatprep.subr.mxu0 0.0
    %332 = vmatpush1.msra.mxu0 %v156
    %333 = vmatprep.subr.mxu0 0.0
    %334 = vmatpush1.msra.mxu0 %v157
    %335 = vmatprep.subr.mxu0 0.0
    %336 = vmatpush1.msra.mxu0 %v158
    %337 = vmatprep.subr.mxu0 0.0
    %338 = vmatpush1.msra.mxu0 %v159
    %339 = vmatprep.subr.mxu0 0.0
    %340 = vmatpush1.msra.mxu0 %v160
    %341 = vmatprep.subr.mxu0 0.0
    %342 = vmatpush1.msra.mxu0 %v161
    %343 = vmatprep.subr.mxu0 0.0
    %344 = vmatpush1.msra.mxu0 %v162
    %345 = vmatprep.subr.mxu0 0.0
    %346 = vmatpush1.msra.mxu0 %v163
    %347 = vmatprep.subr.mxu0 0.0
    %348 = vmatpush1.msra.mxu0 %v164
    %349 = vmatprep.subr.mxu0 0.0
    %350 = vmatpush1.msra.mxu0 %v165
    %351 = vmatprep.subr.mxu0 0.0
    %352 = vmatpush1.msra.mxu0 %v166
    %353 = vmatprep.subr.mxu0 0.0
    %354 = vmatpush1.msra.mxu0 %v167
    %355 = vmatprep.subr.mxu0 0.0
    %356 = vmatpush1.msra.mxu0 %v168
    %357 = vmatprep.subr.mxu0 0.0
    %358 = vmatpush1.msra.mxu0 0.0
    %359 = vmatprep.subr.mxu0 0.0
    %360 = vmatpush1.msra.mxu0 0.0
    %361 = vmatprep.subr.mxu0 0.0
    %362 = vmatpush1.msra.mxu0 0.0
    %363 = vmatprep.subr.mxu0 0.0
    %364 = vmatpush1.msra.mxu0 0.0
    %365 = vmatprep.subr.mxu0 0.0
    %366 = vmatpush1.msra.mxu0 0.0
    %367 = vmatprep.subr.mxu0 0.0
    %368 = vmatpush1.msra.mxu0 0.0
    %369 = vmatprep.subr.mxu0 0.0
    %370 = vmatpush1.msra.mxu0 0.0
    %371 = vmatprep.subr.mxu0 0.0
    %372 = vmatpush1.msra.mxu0 0.0
    %373 = vmatprep.subr.mxu0 0.0
    %374 = vmatpush1.msra.mxu0 0.0
    %375 = vmatprep.subr.mxu0 0.0
    %376 = vmatpush1.msra.mxu0 0.0
    %377 = vmatprep.subr.mxu0 0.0
    %378 = vmatpush1.msra.mxu0 0.0
    %379 = vmatprep.subr.mxu0 0.0
    %380 = vmatpush1.msra.mxu0 0.0
    %381 = vmatprep.subr.mxu0 0.0
    %382 = vmatpush1.msra.mxu0 0.0
    %383 = vmatprep.subr.mxu0 0.0
    %384 = vmatpush1.msra.mxu0 0.0
    %385 = vmatprep.subr.mxu0 0.0
    %386 = vmatpush1.msra.mxu0 0.0
    %387 = vmatprep.subr.mxu0 0.0
    %388 = vmatpush1.msra.mxu0 0.0
    %389 = vmatprep.mubr.f32.mxu0 0.0
    %390 = vmatmul.mubr.f32.gmra.mrb[0].mxu0 %v319
    %v391 = vpop.f32.mrb[0].mxu0
    %v392 = vadd.f32 %v324, %v391
    %v393 = vpop.f32.mrb[0].mxu0
    %394 = vdwg.mxu0
    %v395 = vtanh.pop %v392
    %v396 = vld [vmem:[#allocation2 + $0x3] sm:$0x1]
    %v397 = vlaneseq
    %v398 = vshrl.u32 %v397, 7
    %v399 = vsub.s32 0, %v398
    %v400 = vrot.slane %v396, %v399
    %401 = vmatprep.subr.mxu0 0.0
    %402 = vmatpush1.msra.mxu0 %v153
    %403 = vmatprep.subr.mxu0 0.0
    %404 = vmatpush1.msra.mxu0 %v154
    %405 = vmatprep.subr.mxu0 0.0
    %406 = vmatpush1.msra.mxu0 %v155
    %407 = vmatprep.subr.mxu0 0.0
    %408 = vmatpush1.msra.mxu0 %v156
    %409 = vmatprep.subr.mxu0 0.0
    %410 = vmatpush1.msra.mxu0 %v157
    %411 = vmatprep.subr.mxu0 0.0
    %412 = vmatpush1.msra.mxu0 %v158
    %413 = vmatprep.subr.mxu0 0.0
    %414 = vmatpush1.msra.mxu0 %v159
    %415 = vmatprep.subr.mxu0 0.0
    %416 = vmatpush1.msra.mxu0 %v160
    %417 = vmatprep.subr.mxu0 0.0
    %418 = vmatpush1.msra.mxu0 %v161
    %419 = vmatprep.subr.mxu0 0.0
    %420 = vmatpush1.msra.mxu0 %v162
    %421 = vmatprep.subr.mxu0 0.0
    %422 = vmatpush1.msra.mxu0 %v163
    %423 = vmatprep.subr.mxu0 0.0
    %424 = vmatpush1.msra.mxu0 %v164
    %425 = vmatprep.subr.mxu0 0.0
    %426 = vmatpush1.msra.mxu0 %v165
    %427 = vmatprep.subr.mxu0 0.0
    %428 = vmatpush1.msra.mxu0 %v166
    %429 = vmatprep.subr.mxu0 0.0
    %430 = vmatpush1.msra.mxu0 %v167
    %431 = vmatprep.subr.mxu0 0.0
    %432 = vmatpush1.msra.mxu0 %v168
    %433 = vmatprep.subr.mxu0 0.0
    %434 = vmatpush1.msra.mxu0 0.0
    %435 = vmatprep.subr.mxu0 0.0
    %436 = vmatpush1.msra.mxu0 0.0
    %437 = vmatprep.subr.mxu0 0.0
    %438 = vmatpush1.msra.mxu0 0.0
    %439 = vmatprep.subr.mxu0 0.0
    %440 = vmatpush1.msra.mxu0 0.0
    %441 = vmatprep.subr.mxu0 0.0
    %442 = vmatpush1.msra.mxu0 0.0
    %443 = vmatprep.subr.mxu0 0.0
    %444 = vmatpush1.msra.mxu0 0.0
    %445 = vmatprep.subr.mxu0 0.0
    %446 = vmatpush1.msra.mxu0 0.0
    %447 = vmatprep.subr.mxu0 0.0
    %448 = vmatpush1.msra.mxu0 0.0
    %449 = vmatprep.subr.mxu0 0.0
    %450 = vmatpush1.msra.mxu0 0.0
    %451 = vmatprep.subr.mxu0 0.0
    %452 = vmatpush1.msra.mxu0 0.0
    %453 = vmatprep.subr.mxu0 0.0
    %454 = vmatpush1.msra.mxu0 0.0
    %455 = vmatprep.subr.mxu0 0.0
    %456 = vmatpush1.msra.mxu0 0.0
    %457 = vmatprep.subr.mxu0 0.0
    %458 = vmatpush1.msra.mxu0 0.0
    %459 = vmatprep.subr.mxu0 0.0
    %460 = vmatpush1.msra.mxu0 0.0
    %461 = vmatprep.subr.mxu0 0.0
    %462 = vmatpush1.msra.mxu0 0.0
    %463 = vmatprep.subr.mxu0 0.0
    %464 = vmatpush1.msra.mxu0 0.0
    %465 = vmatprep.mubr.f32.mxu0 0.0
    %466 = vmatmul.mubr.f32.gmra.mrb[0].mxu0 %v395
    %v467 = vpop.f32.mrb[0].mxu0
    %v468 = vadd.f32 %v400, %v467
    %v469 = vpop.f32.mrb[0].mxu0
    %470 = vdwg.mxu0
    %v471 = vtanh.pop %v468
    %v472 = vld [vmem:[#allocation2 + $0x4] sm:$0x1]
    %v473 = vlaneseq
    %v474 = vshrl.u32 %v473, 7
    %v475 = vsub.s32 0, %v474
    %v476 = vrot.slane %v472, %v475
    %477 = vmatprep.subr.mxu0 0.0
    %478 = vmatpush1.msra.mxu0 %v153
    %479 = vmatprep.subr.mxu0 0.0
    %480 = vmatpush1.msra.mxu0 %v154
    %481 = vmatprep.subr.mxu0 0.0
    %482 = vmatpush1.msra.mxu0 %v155
    %483 = vmatprep.subr.mxu0 0.0
    %484 = vmatpush1.msra.mxu0 %v156
    %485 = vmatprep.subr.mxu0 0.0
    %486 = vmatpush1.msra.mxu0 %v157
    %487 = vmatprep.subr.mxu0 0.0
    %488 = vmatpush1.msra.mxu0 %v158
    %489 = vmatprep.subr.mxu0 0.0
    %490 = vmatpush1.msra.mxu0 %v159
    %491 = vmatprep.subr.mxu0 0.0
    %492 = vmatpush1.msra.mxu0 %v160
    %493 = vmatprep.subr.mxu0 0.0
    %494 = vmatpush1.msra.mxu0 %v161
    %495 = vmatprep.subr.mxu0 0.0
    %496 = vmatpush1.msra.mxu0 %v162
    %497 = vmatprep.subr.mxu0 0.0
    %498 = vmatpush1.msra.mxu0 %v163
    %499 = vmatprep.subr.mxu0 0.0
    %500 = vmatpush1.msra.mxu0 %v164
    %501 = vmatprep.subr.mxu0 0.0
    %502 = vmatpush1.msra.mxu0 %v165
    %503 = vmatprep.subr.mxu0 0.0
    %504 = vmatpush1.msra.mxu0 %v166
    %505 = vmatprep.subr.mxu0 0.0
    %506 = vmatpush1.msra.mxu0 %v167
    %507 = vmatprep.subr.mxu0 0.0
    %508 = vmatpush1.msra.mxu0 %v168
    %509 = vmatprep.subr.mxu0 0.0
    %510 = vmatpush1.msra.mxu0 0.0
    %511 = vmatprep.subr.mxu0 0.0
    %512 = vmatpush1.msra.mxu0 0.0
    %513 = vmatprep.subr.mxu0 0.0
    %514 = vmatpush1.msra.mxu0 0.0
    %515 = vmatprep.subr.mxu0 0.0
    %516 = vmatpush1.msra.mxu0 0.0
    %517 = vmatprep.subr.mxu0 0.0
    %518 = vmatpush1.msra.mxu0 0.0
    %519 = vmatprep.subr.mxu0 0.0
    %520 = vmatpush1.msra.mxu0 0.0
    %521 = vmatprep.subr.mxu0 0.0
    %522 = vmatpush1.msra.mxu0 0.0
    %523 = vmatprep.subr.mxu0 0.0
    %524 = vmatpush1.msra.mxu0 0.0
    %525 = vmatprep.subr.mxu0 0.0
    %526 = vmatpush1.msra.mxu0 0.0
    %527 = vmatprep.subr.mxu0 0.0
    %528 = vmatpush1.msra.mxu0 0.0
    %529 = vmatprep.subr.mxu0 0.0
    %530 = vmatpush1.msra.mxu0 0.0
    %531 = vmatprep.subr.mxu0 0.0
    %532 = vmatpush1.msra.mxu0 0.0
    %533 = vmatprep.subr.mxu0 0.0
    %534 = vmatpush1.msra.mxu0 0.0
    %535 = vmatprep.subr.mxu0 0.0
    %536 = vmatpush1.msra.mxu0 0.0
    %537 = vmatprep.subr.mxu0 0.0
    %538 = vmatpush1.msra.mxu0 0.0
    %539 = vmatprep.subr.mxu0 0.0
    %540 = vmatpush1.msra.mxu0 0.0
    %541 = vmatprep.mubr.f32.mxu0 0.0
    %542 = vmatmul.mubr.f32.gmra.mrb[0].mxu0 %v471
    %v543 = vpop.f32.mrb[0].mxu0
    %v544 = vadd.f32 %v476, %v543
    %v545 = vpop.f32.mrb[0].mxu0
    %546 = vdwg.mxu0
    %v547 = vtanh.pop %v544
    %v548 = vld [vmem:[#allocation2 + $0x5] sm:$0x1]
    %v549 = vlaneseq
    %v550 = vshrl.u32 %v549, 7
    %v551 = vsub.s32 0, %v550
    %v552 = vrot.slane %v548, %v551
    %553 = vmatprep.subr.mxu0 0.0
    %554 = vmatpush1.msra.mxu0 %v153
    %555 = vmatprep.subr.mxu0 0.0
    %556 = vmatpush1.msra.mxu0 %v154
    %557 = vmatprep.subr.mxu0 0.0
    %558 = vmatpush1.msra.mxu0 %v155
    %559 = vmatprep.subr.mxu0 0.0
    %560 = vmatpush1.msra.mxu0 %v156
    %561 = vmatprep.subr.mxu0 0.0
    %562 = vmatpush1.msra.mxu0 %v157
    %563 = vmatprep.subr.mxu0 0.0
    %564 = vmatpush1.msra.mxu0 %v158
    %565 = vmatprep.subr.mxu0 0.0
    %566 = vmatpush1.msra.mxu0 %v159
    %567 = vmatprep.subr.mxu0 0.0
    %568 = vmatpush1.msra.mxu0 %v160
    %569 = vmatprep.subr.mxu0 0.0
    %570 = vmatpush1.msra.mxu0 %v161
    %571 = vmatprep.subr.mxu0 0.0
    %572 = vmatpush1.msra.mxu0 %v162
    %573 = vmatprep.subr.mxu0 0.0
    %574 = vmatpush1.msra.mxu0 %v163
    %575 = vmatprep.subr.mxu0 0.0
    %576 = vmatpush1.msra.mxu0 %v164
    %577 = vmatprep.subr.mxu0 0.0
    %578 = vmatpush1.msra.mxu0 %v165
    %579 = vmatprep.subr.mxu0 0.0
    %580 = vmatpush1.msra.mxu0 %v166
    %581 = vmatprep.subr.mxu0 0.0
    %582 = vmatpush1.msra.mxu0 %v167
    %583 = vmatprep.subr.mxu0 0.0
    %584 = vmatpush1.msra.mxu0 %v168
    %585 = vmatprep.subr.mxu0 0.0
    %586 = vmatpush1.msra.mxu0 0.0
    %587 = vmatprep.subr.mxu0 0.0
    %588 = vmatpush1.msra.mxu0 0.0
    %589 = vmatprep.subr.mxu0 0.0
    %590 = vmatpush1.msra.mxu0 0.0
    %591 = vmatprep.subr.mxu0 0.0
    %592 = vmatpush1.msra.mxu0 0.0
    %593 = vmatprep.subr.mxu0 0.0
    %594 = vmatpush1.msra.mxu0 0.0
    %595 = vmatprep.subr.mxu0 0.0
    %596 = vmatpush1.msra.mxu0 0.0
    %597 = vmatprep.subr.mxu0 0.0
    %598 = vmatpush1.msra.mxu0 0.0
    %599 = vmatprep.subr.mxu0 0.0
    %600 = vmatpush1.msra.mxu0 0.0
    %601 = vmatprep.subr.mxu0 0.0
    %602 = vmatpush1.msra.mxu0 0.0
    %603 = vmatprep.subr.mxu0 0.0
    %604 = vmatpush1.msra.mxu0 0.0
    %605 = vmatprep.subr.mxu0 0.0
    %606 = vmatpush1.msra.mxu0 0.0
    %607 = vmatprep.subr.mxu0 0.0
    %608 = vmatpush1.msra.mxu0 0.0
    %609 = vmatprep.subr.mxu0 0.0
    %610 = vmatpush1.msra.mxu0 0.0
    %611 = vmatprep.subr.mxu0 0.0
    %612 = vmatpush1.msra.mxu0 0.0
    %613 = vmatprep.subr.mxu0 0.0
    %614 = vmatpush1.msra.mxu0 0.0
    %615 = vmatprep.subr.mxu0 0.0
    %616 = vmatpush1.msra.mxu0 0.0
    %617 = vmatprep.mubr.f32.mxu0 0.0
    %618 = vmatmul.mubr.f32.gmra.mrb[0].mxu0 %v547
    %v619 = vpop.f32.mrb[0].mxu0
    %v620 = vadd.f32 %v552, %v619
    %v621 = vpop.f32.mrb[0].mxu0
    %622 = vdwg.mxu0
    %v623 = vtanh.pop %v620
    %v624 = vld [vmem:[#allocation2 + $0x6] sm:$0x1]
    %v625 = vlaneseq
    %v626 = vshrl.u32 %v625, 7
    %v627 = vsub.s32 0, %v626
    %v628 = vrot.slane %v624, %v627
    %629 = vmatprep.subr.mxu0 0.0
    %630 = vmatpush1.msra.mxu0 %v153
    %631 = vmatprep.subr.mxu0 0.0
    %632 = vmatpush1.msra.mxu0 %v154
    %633 = vmatprep.subr.mxu0 0.0
    %634 = vmatpush1.msra.mxu0 %v155
    %635 = vmatprep.subr.mxu0 0.0
    %636 = vmatpush1.msra.mxu0 %v156
    %637 = vmatprep.subr.mxu0 0.0
    %638 = vmatpush1.msra.mxu0 %v157
    %639 = vmatprep.subr.mxu0 0.0
    %640 = vmatpush1.msra.mxu0 %v158
    %641 = vmatprep.subr.mxu0 0.0
    %642 = vmatpush1.msra.mxu0 %v159
    %643 = vmatprep.subr.mxu0 0.0
    %644 = vmatpush1.msra.mxu0 %v160
    %645 = vmatprep.subr.mxu0 0.0
    %646 = vmatpush1.msra.mxu0 %v161
    %647 = vmatprep.subr.mxu0 0.0
    %648 = vmatpush1.msra.mxu0 %v162
    %649 = vmatprep.subr.mxu0 0.0
    %650 = vmatpush1.msra.mxu0 %v163
    %651 = vmatprep.subr.mxu0 0.0
    %652 = vmatpush1.msra.mxu0 %v164
    %653 = vmatprep.subr.mxu0 0.0
    %654 = vmatpush1.msra.mxu0 %v165
    %655 = vmatprep.subr.mxu0 0.0
    %656 = vmatpush1.msra.mxu0 %v166
    %657 = vmatprep.subr.mxu0 0.0
    %658 = vmatpush1.msra.mxu0 %v167
    %659 = vmatprep.subr.mxu0 0.0
    %660 = vmatpush1.msra.mxu0 %v168
    %661 = vmatprep.subr.mxu0 0.0
    %662 = vmatpush1.msra.mxu0 0.0
    %663 = vmatprep.subr.mxu0 0.0
    %664 = vmatpush1.msra.mxu0 0.0
    %665 = vmatprep.subr.mxu0 0.0
    %666 = vmatpush1.msra.mxu0 0.0
    %667 = vmatprep.subr.mxu0 0.0
    %668 = vmatpush1.msra.mxu0 0.0
    %669 = vmatprep.subr.mxu0 0.0
    %670 = vmatpush1.msra.mxu0 0.0
    %671 = vmatprep.subr.mxu0 0.0
    %672 = vmatpush1.msra.mxu0 0.0
    %673 = vmatprep.subr.mxu0 0.0
    %674 = vmatpush1.msra.mxu0 0.0
    %675 = vmatprep.subr.mxu0 0.0
    %676 = vmatpush1.msra.mxu0 0.0
    %677 = vmatprep.subr.mxu0 0.0
    %678 = vmatpush1.msra.mxu0 0.0
    %679 = vmatprep.subr.mxu0 0.0
    %680 = vmatpush1.msra.mxu0 0.0
    %681 = vmatprep.subr.mxu0 0.0
    %682 = vmatpush1.msra.mxu0 0.0
    %683 = vmatprep.subr.mxu0 0.0
    %684 = vmatpush1.msra.mxu0 0.0
    %685 = vmatprep.subr.mxu0 0.0
    %686 = vmatpush1.msra.mxu0 0.0
    %687 = vmatprep.subr.mxu0 0.0
    %688 = vmatpush1.msra.mxu0 0.0
    %689 = vmatprep.subr.mxu0 0.0
    %690 = vmatpush1.msra.mxu0 0.0
    %691 = vmatprep.subr.mxu0 0.0
    %692 = vmatpush1.msra.mxu0 0.0
    %693 = vmatprep.mubr.f32.mxu0 0.0
    %694 = vmatmul.mubr.f32.gmra.mrb[0].mxu0 %v623
    %v695 = vpop.f32.mrb[0].mxu0
    %v696 = vadd.f32 %v628, %v695
    %v697 = vpop.f32.mrb[0].mxu0
    %698 = vdwg.mxu0
    %v699 = vtanh.pop %v696
    %v700 = vld [vmem:[#allocation2 + $0x7] sm:$0x1]
    %v701 = vlaneseq
    %v702 = vshrl.u32 %v701, 7
    %v703 = vsub.s32 0, %v702
    %v704 = vrot.slane %v700, %v703
    %705 = vmatprep.subr.mxu0 0.0
    %706 = vmatpush1.msra.mxu0 %v153
    %707 = vmatprep.subr.mxu0 0.0
    %708 = vmatpush1.msra.mxu0 %v154
    %709 = vmatprep.subr.mxu0 0.0
    %710 = vmatpush1.msra.mxu0 %v155
    %711 = vmatprep.subr.mxu0 0.0
    %712 = vmatpush1.msra.mxu0 %v156
    %713 = vmatprep.subr.mxu0 0.0
    %714 = vmatpush1.msra.mxu0 %v157
    %715 = vmatprep.subr.mxu0 0.0
    %716 = vmatpush1.msra.mxu0 %v158
    %717 = vmatprep.subr.mxu0 0.0
    %718 = vmatpush1.msra.mxu0 %v159
    %719 = vmatprep.subr.mxu0 0.0
    %720 = vmatpush1.msra.mxu0 %v160
    %721 = vmatprep.subr.mxu0 0.0
    %722 = vmatpush1.msra.mxu0 %v161
    %723 = vmatprep.subr.mxu0 0.0
    %724 = vmatpush1.msra.mxu0 %v162
    %725 = vmatprep.subr.mxu0 0.0
    %726 = vmatpush1.msra.mxu0 %v163
    %727 = vmatprep.subr.mxu0 0.0
    %728 = vmatpush1.msra.mxu0 %v164
    %729 = vmatprep.subr.mxu0 0.0
    %730 = vmatpush1.msra.mxu0 %v165
    %731 = vmatprep.subr.mxu0 0.0
    %732 = vmatpush1.msra.mxu0 %v166
    %733 = vmatprep.subr.mxu0 0.0
    %734 = vmatpush1.msra.mxu0 %v167
    %735 = vmatprep.subr.mxu0 0.0
    %736 = vmatpush1.msra.mxu0 %v168
    %737 = vmatprep.subr.mxu0 0.0
    %738 = vmatpush1.msra.mxu0 0.0
    %739 = vmatprep.subr.mxu0 0.0
    %740 = vmatpush1.msra.mxu0 0.0
    %741 = vmatprep.subr.mxu0 0.0
    %742 = vmatpush1.msra.mxu0 0.0
    %743 = vmatprep.subr.mxu0 0.0
    %744 = vmatpush1.msra.mxu0 0.0
    %745 = vmatprep.subr.mxu0 0.0
    %746 = vmatpush1.msra.mxu0 0.0
    %747 = vmatprep.subr.mxu0 0.0
    %748 = vmatpush1.msra.mxu0 0.0
    %749 = vmatprep.subr.mxu0 0.0
    %750 = vmatpush1.msra.mxu0 0.0
    %751 = vmatprep.subr.mxu0 0.0
    %752 = vmatpush1.msra.mxu0 0.0
    %753 = vmatprep.subr.mxu0 0.0
    %754 = vmatpush1.msra.mxu0 0.0
    %755 = vmatprep.subr.mxu0 0.0
    %756 = vmatpush1.msra.mxu0 0.0
    %757 = vmatprep.subr.mxu0 0.0
    %758 = vmatpush1.msra.mxu0 0.0
    %759 = vmatprep.subr.mxu0 0.0
    %760 = vmatpush1.msra.mxu0 0.0
    %761 = vmatprep.subr.mxu0 0.0
    %762 = vmatpush1.msra.mxu0 0.0
    %763 = vmatprep.subr.mxu0 0.0
    %764 = vmatpush1.msra.mxu0 0.0
    %765 = vmatprep.subr.mxu0 0.0
    %766 = vmatpush1.msra.mxu0 0.0
    %767 = vmatprep.subr.mxu0 0.0
    %768 = vmatpush1.msra.mxu0 0.0
    %769 = vmatprep.mubr.f32.mxu0 0.0
    %770 = vmatmul.mubr.f32.gmra.mrb[0].mxu0 %v699
    %v771 = vpop.f32.mrb[0].mxu0
    %v772 = vadd.f32 %v704, %v771
    %v773 = vpop.f32.mrb[0].mxu0
    %774 = vdwg.mxu0
    %v775 = vtanh.pop %v772
    %v776 = vlaneseq
    %v777 = vshrl.u32 %v776, 7
    %v778 = vsub.s32 0, %v777
    %v779 = vrot.slane %v775, %v778
    %780 = vst [vmem:[#allocation9] sm:$0xff] %v779
    // Predicated region
    $region30: #{tpu_custom_call.1} parent=1 // pred_check
      _
    $region31: #{tpu_custom_call.1} parent=1 // pred_check_branch
      %782 = sbr.rel (0) target = $region33
    $region32: #{tpu_custom_call.1} parent=1 // pred_region
      %s784 = ssub.s32 128, 128
      %785 = vsyncadd [#allocation5], %s784
      %s787 = sshll.u32 [#allocation9], 4
      %s788 = int_to_ptr.vmem [resolvable:$true] %s787
      %790 = dma.vmem_to_hbm [thread:$0]  %s788, 128, %s4, [#allocation5]
    $region33: #{tpu_custom_call.1} parent=1 // pred_fallthru
      _
    // Predicated region
    $region34: #{tpu_custom_call.1} parent=1 // pred_check
      _
    $region35: #{tpu_custom_call.1} parent=1 // pred_check_branch
      %792 = sbr.rel (0) target = $region37
    $region36: #{tpu_custom_call.1} parent=1 // pred_region
      %793 = dma.done [#allocation5], 128
    $region37: #{tpu_custom_call.1} parent=1 // pred_fallthru
      _
    %794 = vsyncpa [#allocation4], 1
    %795 = vsyncpa [#allocation7], 1
    %796 = vsyncpa [#allocation5], 1

</llo_original>
